<compile_context>
chip_gen: v6e
topology: v6e:2x2x1
jax: 0.10.0
libtpu: 0.0.40
codegen_flags: <defaults>
</compile_context>

<pallas_src>
import numpy as np

import jax
import jax.numpy as jnp
from jax.experimental import pallas as pl
from jax.experimental.pallas import tpu as pltpu


# ----------------------------------------------------------------------------
# Model configuration (small, deterministic)
# ----------------------------------------------------------------------------
B = 2                       # batch
L = 1024                    # waveform length
T = 8                       # frames  (F = 128 -> lane-full contraction)
F = L // T                  # samples per frame (128)
D_ENC = 128                 # audio-encoder embedding dim
D_LLM = 128                 # LLM hidden dim
TEMPORAL_PREFIX_LEN = 4
GLOBAL_PREFIX_LEN = 2
P = TEMPORAL_PREFIX_LEN + GLOBAL_PREFIX_LEN
S = 8                       # label sequence length
V = 256                     # vocab size

N_POOL = B * TEMPORAL_PREFIX_LEN + B          # pooled temporal rows + global rows
MAP_OUT = D_LLM + GLOBAL_PREFIX_LEN * D_LLM   # merged mapping output width (384)
N_PRED = B * S                                # number of next-token predictions

# lane offsets inside the merged weight / bias slabs (all multiples of 128)
OFF_ENC = 0
OFF_MAP = OFF_ENC + D_ENC          # 128
OFF_DEC = OFF_MAP + MAP_OUT        # 512
OFF_LM = OFF_DEC + D_LLM           # 640
W_TOT = OFF_LM + V                 # 896


# ----------------------------------------------------------------------------
# Single fused Pallas kernel: encoder -> mapping -> decoder -> LM head + CE
# ----------------------------------------------------------------------------
def _fused_forward_kernel(
    frames_ref,     # [B*T, F]        f32  framed waveform
    pool_ref,       # [N_POOL, B*T]   f32  constant mean-pool operator
    w_ref,          # [128, W_TOT]    f32  [enc_w | map_w | dec_w1 | lm_w]
    b_ref,          # [1, W_TOT]      f32  [enc_b | map_b | dec_b1 | lm_b]
    tok_emb_ref,    # [V, D_LLM]      f32  token-embedding table
    tgt_ref,        # [N_PRED, 1]     i32  next-token targets (batch-major)
    prev_ref,       # [N_PRED, 1]     i32  previous-token ids (-1 at s == 0)
    loss_ref,       # [1, 128]        f32  lane-dense mean-loss splat
):
    f32 = jnp.float32

    # ---- lane-aligned views into the merged parameter slabs ----------------
    enc_w = w_ref[:, OFF_ENC:OFF_MAP]
    map_w = w_ref[:, OFF_MAP:OFF_DEC]
    dec_w1 = w_ref[:, OFF_DEC:OFF_LM]
    lm_w = w_ref[:, OFF_LM:W_TOT]
    enc_b = b_ref[:, OFF_ENC:OFF_MAP]
    map_b = b_ref[:, OFF_MAP:OFF_DEC]
    dec_b1 = b_ref[:, OFF_DEC:OFF_LM]
    lm_b = b_ref[:, OFF_LM:W_TOT]

    # ---- audio encoder (synthetic Cnn14 stand-in): frame linear + ReLU -----
    temporal = jnp.dot(frames_ref[...], enc_w, preferred_element_type=f32)
    temporal = jnp.maximum(temporal + enc_b, 0.0)                  # [B*T, D_ENC]

    # ---- temporal avg-pool + per-batch global mean as one small GEMM -------
    pooled = jnp.dot(pool_ref[...], temporal,
                     preferred_element_type=f32)                   # [N_POOL, D_ENC]

    # ---- mapping network: merged temporal+global projection GEMM -----------
    #   cols [0:D_LLM]        temporal-prefix projection (map_t_w)
    #   cols [D_LLM:MAP_OUT]  global-prefix projection   (map_g_w)
    prefix_raw = jnp.dot(pooled, map_w, preferred_element_type=f32) + map_b
    # only the LAST global prefix token precedes the first label position
    row0 = B * TEMPORAL_PREFIX_LEN
    col0 = D_LLM + (GLOBAL_PREFIX_LEN - 1) * D_LLM
    g_last = prefix_raw[row0:row0 + B, col0:col0 + D_LLM]          # [B, D_LLM]

    # ---- teacher-forced decoder inputs, fully vectorised --------------------
    # token-embedding "gather" as a one-hot MXU matmul (prev id < 0 -> zeros)
    lane_v = jax.lax.broadcasted_iota(jnp.int32, (N_PRED, V), 1)
    onehot_prev = (lane_v == prev_ref[...]).astype(f32)            # [N_PRED, V]
    x_pred = jnp.dot(onehot_prev, tok_emb_ref[...],
                     preferred_element_type=f32)                   # [N_PRED, D_LLM]
    # inject the last prefix token at each sequence start (rows b*S)
    row_col = jax.lax.broadcasted_iota(jnp.int32, (N_PRED, 1), 0)
    for b in range(B):  # static unroll over the tiny batch
        x_pred = x_pred + jnp.where(row_col == b * S, g_last[b:b + 1, :], 0.0)

    # ---- decoder hidden layer + LM head + cross-entropy ---------------------
    h = jnp.dot(x_pred, dec_w1, preferred_element_type=f32)
    h = jnp.maximum(h + dec_b1, 0.0)                               # [N_PRED, D_LLM]
    logits = jnp.dot(h, lm_w, preferred_element_type=f32) + lm_b   # [N_PRED, V]

    m = jnp.max(logits, axis=-1, keepdims=True)                    # [N_PRED, 1]
    lse = m + jnp.log(jnp.sum(jnp.exp(logits - m), axis=-1, keepdims=True))
    tgt_onehot = (lane_v == tgt_ref[...]).astype(f32)              # [N_PRED, V]
    tgt = jnp.sum(logits * tgt_onehot, axis=-1, keepdims=True)     # [N_PRED, 1]

    loss_mean = jnp.sum(lse - tgt, axis=0, keepdims=True) * (1.0 / N_PRED)
    loss_ref[...] = jnp.broadcast_to(loss_mean, (1, 128))


# ----------------------------------------------------------------------------
# Parameters (synthetic stand-ins) + constant pooling operator
# ----------------------------------------------------------------------------
def _build_pool_matrix():
    """Mean-pool operator [N_POOL, B*T]: first B*TP rows average T//TP frames
    per temporal-prefix token, last B rows are the per-batch global mean."""
    pm = np.zeros((N_POOL, B * T), np.float32)
    fpt = T // TEMPORAL_PREFIX_LEN
    for b in range(B):
        for p in range(TEMPORAL_PREFIX_LEN):
            r = b * TEMPORAL_PREFIX_LEN + p
            s0 = b * T + p * fpt
            pm[r, s0:s0 + fpt] = 1.0 / fpt
        pm[B * TEMPORAL_PREFIX_LEN + b, b * T:(b + 1) * T] = 1.0 / T
    return jnp.asarray(pm)


def init_params(key):
    ks = jax.random.split(key, 5)
    scale = 0.02
    enc_w = scale * jax.random.normal(ks[0], (F, D_ENC), jnp.float32)
    map_w = scale * jax.random.normal(ks[1], (D_ENC, MAP_OUT), jnp.float32)
    dec_w1 = scale * jax.random.normal(ks[2], (D_LLM, D_LLM), jnp.float32)
    lm_w = scale * jax.random.normal(ks[3], (D_LLM, V), jnp.float32)
    tok_emb = scale * jax.random.normal(ks[4], (V, D_LLM), jnp.float32)
    # merged lane-aligned parameter slabs (built once at init, no per-call cost)
    w_all = jnp.concatenate([enc_w, map_w, dec_w1, lm_w], axis=1)   # [128, 896]
    b_all = jnp.zeros((1, W_TOT), jnp.float32)
    return {
        "w_all": w_all,
        "b_all": b_all,
        "tok_emb": tok_emb,
        "pool_m": _build_pool_matrix(),   # constant (non-learned) pooling operator
    }


# ----------------------------------------------------------------------------
# Forward pass (mirrors PrefixModelForCaptioning.forward) — one pallas_call
# ----------------------------------------------------------------------------
def prefix_model_forward(params, waveforms, labels):
    # tiny host-side glue: free reshapes + 16-int label shuffling only
    frames = waveforms.reshape(B * T, F)
    labels_i32 = labels.astype(jnp.int32)
    tgt_col = labels_i32.reshape(N_PRED, 1)                         # targets, batch-major
    prev_col = jnp.concatenate(
        [jnp.full((B, 1), -1, jnp.int32), labels_i32[:, : S - 1]],
        axis=1).reshape(N_PRED, 1)                                  # prev token (-1 at s==0)

    loss_block = pl.pallas_call(
        _fused_forward_kernel,
        out_shape=jax.ShapeDtypeStruct((1, 128), jnp.float32),
        in_specs=[pl.BlockSpec(memory_space=pltpu.MemorySpace.VMEM)] * 7,
        out_specs=pl.BlockSpec(memory_space=pltpu.MemorySpace.VMEM),
    )(frames, params["pool_m"], params["w_all"], params["b_all"],
      params["tok_emb"], tgt_col, prev_col)
    return loss_block[0, 0]


# ----------------------------------------------------------------------------
# Pure-JAX reference of the same synthetic forward (correctness check)
# ----------------------------------------------------------------------------
def reference_forward(params, waveforms, labels):
    w, b = params["w_all"], params["b_all"]
    enc_w, enc_b = w[:, OFF_ENC:OFF_MAP], b[:, OFF_ENC:OFF_MAP]
    map_w, map_b = w[:, OFF_MAP:OFF_DEC], b[:, OFF_MAP:OFF_DEC]
    dec_w1, dec_b1 = w[:, OFF_DEC:OFF_LM], b[:, OFF_DEC:OFF_LM]
    lm_w, lm_b = w[:, OFF_LM:W_TOT], b[:, OFF_LM:W_TOT]

    frames = waveforms.reshape(B * T, F)
    temporal = jax.nn.relu(frames @ enc_w + enc_b)
    pooled = params["pool_m"] @ temporal
    prefix_raw = pooled @ map_w + map_b
    row0 = B * TEMPORAL_PREFIX_LEN
    col0 = D_LLM + (GLOBAL_PREFIX_LEN - 1) * D_LLM
    g_last = prefix_raw[row0:row0 + B, col0:col0 + D_LLM]           # [B, D_LLM]

    tok_emb_in = jnp.take(params["tok_emb"],
                          labels[:, : S - 1].reshape(-1), axis=0
                          ).reshape(B, S - 1, D_LLM)
    x_pred = jnp.concatenate([g_last[:, None, :], tok_emb_in],
                             axis=1).reshape(B * S, D_LLM)
    h = jax.nn.relu(x_pred @ dec_w1 + dec_b1)
    logits = h @ lm_w + lm_b
    targets = labels.reshape(-1)
    lse = jax.scipy.special.logsumexp(logits, axis=-1)
    tgt = jnp.take_along_axis(logits, targets[:, None], axis=-1)[:, 0]
    return jnp.mean(lse - tgt)


# ----------------------------------------------------------------------------
if __name__ == "__main__":
    key = jax.random.PRNGKey(0)
    k_params, k_wave, k_labels = jax.random.split(key, 3)

    params = init_params(k_params)
    waveforms = jax.random.normal(k_wave, (B, L), jnp.float32)
    # labels are generated in-range [0, V); real data would need a range check
    labels = jax.random.randint(k_labels, (B, S), 0, V, jnp.int32)

    loss = jax.jit(prefix_model_forward)(params, waveforms, labels)
    jax.block_until_ready(loss)

    ref = reference_forward(params, waveforms, labels)
    assert loss.shape == () and jnp.isfinite(loss)
    assert jnp.allclose(loss, ref, rtol=1e-2, atol=1e-2), (loss, ref)
    print("KERNEL_OK")
</pallas_src>

<mosaic_0001>
module attributes {stable_mosaic.version = 11 : i64} {
  func.func @_fused_forward_kernel(%arg0: memref<16x128xf32, #tpu.memory_space<vmem>>, %arg1: memref<10x16xf32, #tpu.memory_space<vmem>>, %arg2: memref<128x896xf32, #tpu.memory_space<vmem>>, %arg3: memref<1x896xf32, #tpu.memory_space<vmem>>, %arg4: memref<256x128xf32, #tpu.memory_space<vmem>>, %arg5: memref<16x1xi32, #tpu.memory_space<vmem>>, %arg6: memref<16x1xi32, #tpu.memory_space<vmem>>, %arg7: memref<1x128xf32, #tpu.memory_space<vmem>>) attributes {dimension_semantics = [], scalar_prefetch = 0 : i64, scratch_operands = 0 : i64, tpu.core_type = #tpu.core_type<tc>} {
    %c0 = arith.constant 0 : index
    %c0_0 = arith.constant 0 : index
    %0 = vector.load %arg2[%c0, %c0_0] : memref<128x896xf32, #tpu.memory_space<vmem>>, vector<128x128xf32>
    %c0_1 = arith.constant 0 : index
    %c128 = arith.constant 128 : index
    %1 = vector.load %arg2[%c0_1, %c128] : memref<128x896xf32, #tpu.memory_space<vmem>>, vector<128x384xf32>
    %c0_2 = arith.constant 0 : index
    %c512 = arith.constant 512 : index
    %2 = vector.load %arg2[%c0_2, %c512] : memref<128x896xf32, #tpu.memory_space<vmem>>, vector<128x128xf32>
    %c0_3 = arith.constant 0 : index
    %c640 = arith.constant 640 : index
    %3 = vector.load %arg2[%c0_3, %c640] : memref<128x896xf32, #tpu.memory_space<vmem>>, vector<128x256xf32>
    %c0_4 = arith.constant 0 : index
    %c0_5 = arith.constant 0 : index
    %4 = vector.load %arg3[%c0_4, %c0_5] : memref<1x896xf32, #tpu.memory_space<vmem>>, vector<1x128xf32>
    %c0_6 = arith.constant 0 : index
    %c128_7 = arith.constant 128 : index
    %5 = vector.load %arg3[%c0_6, %c128_7] : memref<1x896xf32, #tpu.memory_space<vmem>>, vector<1x384xf32>
    %c0_8 = arith.constant 0 : index
    %c512_9 = arith.constant 512 : index
    %6 = vector.load %arg3[%c0_8, %c512_9] : memref<1x896xf32, #tpu.memory_space<vmem>>, vector<1x128xf32>
    %c0_10 = arith.constant 0 : index
    %c640_11 = arith.constant 640 : index
    %7 = vector.load %arg3[%c0_10, %c640_11] : memref<1x896xf32, #tpu.memory_space<vmem>>, vector<1x256xf32>
    %c0_12 = arith.constant 0 : index
    %c0_13 = arith.constant 0 : index
    %8 = vector.load %arg0[%c0_12, %c0_13] : memref<16x128xf32, #tpu.memory_space<vmem>>, vector<16x128xf32>
    %cst = arith.constant dense<0.000000e+00> : vector<16x128xf32>
    %9 = tpu.matmul %8, %0, %cst {dimension_numbers = #tpu.dot_dimension_numbers<[1], [0], [0], [1], [0, 0, 1, 1], [], []>} : vector<16x128xf32>, vector<128x128xf32>, vector<16x128xf32> -> vector<16x128xf32>
    %10 = vector.broadcast %4 : vector<1x128xf32> to vector<16x128xf32>
    %11 = arith.addf %9, %10 : vector<16x128xf32>
    %cst_14 = arith.constant 0.000000e+00 : f32
    %12 = vector.broadcast %cst_14 : f32 to vector<16x128xf32>
    %13 = arith.maximumf %11, %12 : vector<16x128xf32>
    %c0_15 = arith.constant 0 : index
    %c0_16 = arith.constant 0 : index
    %14 = vector.load %arg1[%c0_15, %c0_16] : memref<10x16xf32, #tpu.memory_space<vmem>>, vector<10x16xf32>
    %cst_17 = arith.constant dense<0.000000e+00> : vector<10x128xf32>
    %15 = tpu.matmul %14, %13, %cst_17 {dimension_numbers = #tpu.dot_dimension_numbers<[1], [0], [0], [1], [0, 0, 1, 1], [], []>} : vector<10x16xf32>, vector<16x128xf32>, vector<10x128xf32> -> vector<10x128xf32>
    %cst_18 = arith.constant dense<0.000000e+00> : vector<10x384xf32>
    %16 = tpu.matmul %15, %1, %cst_18 {dimension_numbers = #tpu.dot_dimension_numbers<[1], [0], [0], [1], [0, 0, 1, 1], [], []>} : vector<10x128xf32>, vector<128x384xf32>, vector<10x384xf32> -> vector<10x384xf32>
    %17 = vector.broadcast %5 : vector<1x384xf32> to vector<10x384xf32>
    %18 = arith.addf %16, %17 : vector<10x384xf32>
    %19 = vector.extract_strided_slice %18 {offsets = [8, 256], sizes = [2, 128], strides = [1, 1]} : vector<10x384xf32> to vector<2x128xf32>
    %20 = tpu.iota {dimensions = array<i32: 1>} : vector<16x256xi32>
    %c0_19 = arith.constant 0 : index
    %c0_20 = arith.constant 0 : index
    %21 = vector.load %arg6[%c0_19, %c0_20] : memref<16x1xi32, #tpu.memory_space<vmem>>, vector<16x1xi32>
    %22 = vector.broadcast %21 : vector<16x1xi32> to vector<16x256xi32>
    %23 = arith.cmpi eq, %20, %22 : vector<16x256xi32>
    %24 = arith.extui %23 : vector<16x256xi1> to vector<16x256xi32>
    %25 = arith.sitofp %24 : vector<16x256xi32> to vector<16x256xf32>
    %c0_21 = arith.constant 0 : index
    %c0_22 = arith.constant 0 : index
    %26 = vector.load %arg4[%c0_21, %c0_22] : memref<256x128xf32, #tpu.memory_space<vmem>>, vector<256x128xf32>
    %cst_23 = arith.constant dense<0.000000e+00> : vector<16x128xf32>
    %27 = tpu.matmul %25, %26, %cst_23 {dimension_numbers = #tpu.dot_dimension_numbers<[1], [0], [0], [1], [0, 0, 1, 1], [], []>} : vector<16x256xf32>, vector<256x128xf32>, vector<16x128xf32> -> vector<16x128xf32>
    %28 = tpu.iota {dimensions = array<i32: 0>} : vector<16x1xi32>
    %c0_i32 = arith.constant 0 : i32
    %29 = vector.broadcast %c0_i32 : i32 to vector<16x1xi32>
    %30 = arith.cmpi eq, %28, %29 : vector<16x1xi32>
    %31 = vector.extract_strided_slice %19 {offsets = [0, 0], sizes = [1, 128], strides = [1, 1]} : vector<2x128xf32> to vector<1x128xf32>
    %cst_24 = arith.constant 0.000000e+00 : f32
    %32 = vector.shape_cast %30 : vector<16x1xi1> to vector<16x1xi1>
    %33 = vector.broadcast %32 : vector<16x1xi1> to vector<16x128xi1>
    %34 = vector.shape_cast %31 : vector<1x128xf32> to vector<1x128xf32>
    %35 = vector.broadcast %34 : vector<1x128xf32> to vector<16x128xf32>
    %36 = vector.broadcast %cst_24 : f32 to vector<16x128xf32>
    %37 = arith.select %33, %35, %36 : vector<16x128xi1>, vector<16x128xf32>
    %38 = arith.addf %27, %37 : vector<16x128xf32>
    %c8_i32 = arith.constant 8 : i32
    %39 = vector.broadcast %c8_i32 : i32 to vector<16x1xi32>
    %40 = arith.cmpi eq, %28, %39 : vector<16x1xi32>
    %41 = vector.extract_strided_slice %19 {offsets = [1, 0], sizes = [1, 128], strides = [1, 1]} : vector<2x128xf32> to vector<1x128xf32>
    %cst_25 = arith.constant 0.000000e+00 : f32
    %42 = vector.shape_cast %40 : vector<16x1xi1> to vector<16x1xi1>
    %43 = vector.broadcast %42 : vector<16x1xi1> to vector<16x128xi1>
    %44 = vector.shape_cast %41 : vector<1x128xf32> to vector<1x128xf32>
    %45 = vector.broadcast %44 : vector<1x128xf32> to vector<16x128xf32>
    %46 = vector.broadcast %cst_25 : f32 to vector<16x128xf32>
    %47 = arith.select %43, %45, %46 : vector<16x128xi1>, vector<16x128xf32>
    %48 = arith.addf %38, %47 : vector<16x128xf32>
    %cst_26 = arith.constant dense<0.000000e+00> : vector<16x128xf32>
    %49 = tpu.matmul %48, %2, %cst_26 {dimension_numbers = #tpu.dot_dimension_numbers<[1], [0], [0], [1], [0, 0, 1, 1], [], []>} : vector<16x128xf32>, vector<128x128xf32>, vector<16x128xf32> -> vector<16x128xf32>
    %50 = vector.broadcast %6 : vector<1x128xf32> to vector<16x128xf32>
    %51 = arith.addf %49, %50 : vector<16x128xf32>
    %cst_27 = arith.constant 0.000000e+00 : f32
    %52 = vector.broadcast %cst_27 : f32 to vector<16x128xf32>
    %53 = arith.maximumf %51, %52 : vector<16x128xf32>
    %cst_28 = arith.constant dense<0.000000e+00> : vector<16x256xf32>
    %54 = tpu.matmul %53, %3, %cst_28 {dimension_numbers = #tpu.dot_dimension_numbers<[1], [0], [0], [1], [0, 0, 1, 1], [], []>} : vector<16x128xf32>, vector<128x256xf32>, vector<16x256xf32> -> vector<16x256xf32>
    %55 = vector.broadcast %7 : vector<1x256xf32> to vector<16x256xf32>
    %56 = arith.addf %54, %55 : vector<16x256xf32>
    %cst_29 = arith.constant dense<0xFF800000> : vector<16xf32>
    %57 = vector.multi_reduction <maximumf>, %56, %cst_29 [1] : vector<16x256xf32> to vector<16xf32>
    %58 = vector.shape_cast %57 : vector<16xf32> to vector<16x1xf32>
    %59 = vector.broadcast %58 : vector<16x1xf32> to vector<16x256xf32>
    %60 = arith.subf %56, %59 : vector<16x256xf32>
    %61 = math.exp %60 : vector<16x256xf32>
    %cst_30 = arith.constant dense<0.000000e+00> : vector<16xf32>
    %62 = vector.multi_reduction <add>, %61, %cst_30 [1] : vector<16x256xf32> to vector<16xf32>
    %63 = vector.shape_cast %62 : vector<16xf32> to vector<16x1xf32>
    %64 = math.log %63 : vector<16x1xf32>
    %65 = arith.addf %58, %64 : vector<16x1xf32>
    %c0_31 = arith.constant 0 : index
    %c0_32 = arith.constant 0 : index
    %66 = vector.load %arg5[%c0_31, %c0_32] : memref<16x1xi32, #tpu.memory_space<vmem>>, vector<16x1xi32>
    %67 = vector.broadcast %66 : vector<16x1xi32> to vector<16x256xi32>
    %68 = arith.cmpi eq, %20, %67 : vector<16x256xi32>
    %69 = arith.extui %68 : vector<16x256xi1> to vector<16x256xi32>
    %70 = arith.sitofp %69 : vector<16x256xi32> to vector<16x256xf32>
    %71 = arith.mulf %56, %70 : vector<16x256xf32>
    %cst_33 = arith.constant dense<0.000000e+00> : vector<16xf32>
    %72 = vector.multi_reduction <add>, %71, %cst_33 [1] : vector<16x256xf32> to vector<16xf32>
    %73 = vector.shape_cast %72 : vector<16xf32> to vector<16x1xf32>
    %74 = arith.subf %65, %73 : vector<16x1xf32>
    %cst_34 = arith.constant dense<0.000000e+00> : vector<1xf32>
    %75 = vector.multi_reduction <add>, %74, %cst_34 [0] : vector<16x1xf32> to vector<1xf32>
    %76 = vector.shape_cast %75 : vector<1xf32> to vector<1x1xf32>
    %cst_35 = arith.constant 6.250000e-02 : f32
    %77 = vector.broadcast %cst_35 : f32 to vector<1x1xf32>
    %78 = arith.mulf %76, %77 : vector<1x1xf32>
    %79 = vector.shape_cast %78 : vector<1x1xf32> to vector<1x1xf32>
    %80 = vector.broadcast %79 : vector<1x1xf32> to vector<1x128xf32>
    %c0_36 = arith.constant 0 : index
    %c0_37 = arith.constant 0 : index
    %81 = vector.load %arg7[%c0_36, %c0_37] : memref<1x128xf32, #tpu.memory_space<vmem>>, vector<1x128xf32>
    tpu.vector_store %arg7[%c0_36, %c0_37], %80 {strides = array<i32>} : memref<1x128xf32, #tpu.memory_space<vmem>>, vector<1x128xf32>,
    return
  }
}

</mosaic_0001>

<llo_original>
// kernel: prefix_model_forward.1
$region0: #{prefix_model_forward.1}
  #allocation0 [shape = 'u32[]', space=smem, size = 0x4, offset = 0x4, fixed_abs, tag = 'smem constant byte address 0x4 - core index']
  #allocation1 [shape = 'u32[144,128]{1,0:T(1,128)}', space=vmem, size = 0x12000, scoped, tag = 'internal scratch']
  %s0 = inlined_call_operand.vmem [shape: f32[16,128], index: 0, kind: input, shape index: {}]
  %s1 = inlined_call_operand.vmem [shape: f32[10,16], index: 1, kind: input, shape index: {}]
  %s2 = inlined_call_operand.hbm [shape: f32[128,896], index: 2, kind: input, shape index: {}]
  %s3 = inlined_call_operand.vmem [shape: f32[1,896], index: 3, kind: input, shape index: {}]
  %s4 = inlined_call_operand.hbm [shape: f32[256,128], index: 4, kind: input, shape index: {}]
  %s5 = inlined_call_operand.vmem [shape: s32[16,1], index: 5, kind: input, shape index: {}]
  %s6 = inlined_call_operand.vmem [shape: s32[16,1], index: 6, kind: input, shape index: {}]
  %s7 = inlined_call_operand.hbm [shape: f32[1,128], index: 7, kind: output, shape index: {}]
  %s8 = sld [smem:[#allocation0]]
  $region46: #{prefix_model_forward.1} parent=0
    _
  %s10 = ssub.s32 1, %s8
  %s11 = scalar_select 0, %s10, %s8
  $region1: #{prefix_model_forward.1} parent=0
    #allocation2 [shape = 'u8[458752]{0}', space=vmem, size = 0x70000, scoped, tag = 'input window, operand 2, single buffered']
    #allocation3 [shape = 's32[1]{0}', space=sflag, size = 0x4, scoped, tag = 'scoped memory for prefix_model_forward.1']
    #allocation4 [shape = 's32[1]{0}', space=sflag, size = 0x4, scoped, tag = 'scoped memory for prefix_model_forward.1']
    #allocation5 [shape = 'u8[131072]{0}', space=vmem, size = 0x20000, scoped, tag = 'input window, operand 4, single buffered']
    #allocation6 [shape = 's32[1]{0}', space=sflag, size = 0x4, scoped, tag = 'scoped memory for prefix_model_forward.1']
    #allocation7 [shape = 'u8[512]{0}', space=vmem, size = 0x400, scoped, tag = 'output window, operand 0, single buffered']
    %12 = vsyncpa [#allocation3], 0
    %13 = vsyncpa [#allocation6], 0
    %14 = vsyncpa [#allocation4], 0
    // Predicated region
    $region2: #{prefix_model_forward.1} parent=1 // pred_check
      _
    $region3: #{prefix_model_forward.1} parent=1 // pred_check_branch
      %16 = sbr.rel (0) target = $region5
    $region4: #{prefix_model_forward.1} parent=1 // pred_region
      _
    $region5: #{prefix_model_forward.1} parent=1 // pred_fallthru
      _
    // Predicated region
    $region6: #{prefix_model_forward.1} parent=1 // pred_check
      _
    $region7: #{prefix_model_forward.1} parent=1 // pred_check_branch
      %18 = sbr.rel (0) target = $region9
    $region8: #{prefix_model_forward.1} parent=1 // pred_region
      _
    $region9: #{prefix_model_forward.1} parent=1 // pred_fallthru
      _
    // Predicated region
    $region10: #{prefix_model_forward.1} parent=1 // pred_check
      _
    $region11: #{prefix_model_forward.1} parent=1 // pred_check_branch
      %20 = sbr.rel (0) target = $region13
    $region12: #{prefix_model_forward.1} parent=1 // pred_region
      %s22 = ssub.s32 14336, 14336
      %23 = vsyncadd [#allocation3], %s22
      %s24 = sshll.u32 [#allocation2], 4
      %s25 = int_to_ptr.vmem [resolvable:$true] %s24
      %30 = dma.hbm_to_vmem [thread:$0]  %s2, 14336, %s25, [#allocation3], 896, 896, 56
    $region13: #{prefix_model_forward.1} parent=1 // pred_fallthru
      _
    // Predicated region
    $region14: #{prefix_model_forward.1} parent=1 // pred_check
      _
    $region15: #{prefix_model_forward.1} parent=1 // pred_check_branch
      %32 = sbr.rel (0) target = $region17
    $region16: #{prefix_model_forward.1} parent=1 // pred_region
      _
    $region17: #{prefix_model_forward.1} parent=1 // pred_fallthru
      _
    // Predicated region
    $region18: #{prefix_model_forward.1} parent=1 // pred_check
      _
    $region19: #{prefix_model_forward.1} parent=1 // pred_check_branch
      %34 = sbr.rel (0) target = $region21
    $region20: #{prefix_model_forward.1} parent=1 // pred_region
      %s36 = ssub.s32 4096, 4096
      %37 = vsyncadd [#allocation6], %s36
      %s38 = sshll.u32 [#allocation5], 4
      %s39 = int_to_ptr.vmem [resolvable:$true] %s38
      %44 = dma.hbm_to_vmem [thread:$0]  %s4, 4096, %s39, [#allocation6], 128, 128, 8
    $region21: #{prefix_model_forward.1} parent=1 // pred_fallthru
      _
    // Predicated region
    $region22: #{prefix_model_forward.1} parent=1 // pred_check
      _
    $region23: #{prefix_model_forward.1} parent=1 // pred_check_branch
      %46 = sbr.rel (0) target = $region25
    $region24: #{prefix_model_forward.1} parent=1 // pred_region
      _
    $region25: #{prefix_model_forward.1} parent=1 // pred_fallthru
      _
    // Predicated region
    $region26: #{prefix_model_forward.1} parent=1 // pred_check
      _
    $region27: #{prefix_model_forward.1} parent=1 // pred_check_branch
      %48 = sbr.rel (0) target = $region29
    $region28: #{prefix_model_forward.1} parent=1 // pred_region
      _
    $region29: #{prefix_model_forward.1} parent=1 // pred_fallthru
      _
    // Predicated region
    $region30: #{prefix_model_forward.1} parent=1 // pred_check
      _
    $region31: #{prefix_model_forward.1} parent=1 // pred_check_branch
      %50 = sbr.rel (0) target = $region33
    $region32: #{prefix_model_forward.1} parent=1 // pred_region
      %51 = dma.done [#allocation3], 14336
    $region33: #{prefix_model_forward.1} parent=1 // pred_fallthru
      _
    // Predicated region
    $region34: #{prefix_model_forward.1} parent=1 // pred_check
      _
    $region35: #{prefix_model_forward.1} parent=1 // pred_check_branch
      %53 = sbr.rel (0) target = $region37
    $region36: #{prefix_model_forward.1} parent=1 // pred_region
      %54 = dma.done [#allocation6], 4096
    $region37: #{prefix_model_forward.1} parent=1 // pred_fallthru
      _
    %v55 = vld [vmem:[#allocation2] sm:$0xff]
    %v56 = vld [vmem:[#allocation2 + $0x38] sm:$0xff]
    %v57 = vld [vmem:[#allocation2 + $0x70] sm:$0xff]
    %v58 = vld [vmem:[#allocation2 + $0xa8] sm:$0xff]
    %v59 = vld [vmem:[#allocation2 + $0xe0] sm:$0xff]
    %v60 = vld [vmem:[#allocation2 + $0x118] sm:$0xff]
    %v61 = vld [vmem:[#allocation2 + $0x150] sm:$0xff]
    %v62 = vld [vmem:[#allocation2 + $0x188] sm:$0xff]
    %v63 = vld [vmem:[#allocation2 + $0x1c0] sm:$0xff]
    %v64 = vld [vmem:[#allocation2 + $0x1f8] sm:$0xff]
    %v65 = vld [vmem:[#allocation2 + $0x230] sm:$0xff]
    %v66 = vld [vmem:[#allocation2 + $0x268] sm:$0xff]
    %v67 = vld [vmem:[#allocation2 + $0x2a0] sm:$0xff]
    %v68 = vld [vmem:[#allocation2 + $0x2d8] sm:$0xff]
    %v69 = vld [vmem:[#allocation2 + $0x310] sm:$0xff]
    %v70 = vld [vmem:[#allocation2 + $0x348] sm:$0xff]
    %v71 = vld [vmem:[#allocation2 + $0x18] sm:$0xff]
    %v72 = vld [vmem:[#allocation2 + $0x50] sm:$0xff]
    %v73 = vld [vmem:[#allocation2 + $0x88] sm:$0xff]
    %v74 = vld [vmem:[#allocation2 + $0xc0] sm:$0xff]
    %v75 = vld [vmem:[#allocation2 + $0xf8] sm:$0xff]
    %v76 = vld [vmem:[#allocation2 + $0x130] sm:$0xff]
    %v77 = vld [vmem:[#allocation2 + $0x168] sm:$0xff]
    %v78 = vld [vmem:[#allocation2 + $0x1a0] sm:$0xff]
    %v79 = vld [vmem:[#allocation2 + $0x1d8] sm:$0xff]
    %v80 = vld [vmem:[#allocation2 + $0x210] sm:$0xff]
    %v81 = vld [vmem:[#allocation2 + $0x248] sm:$0xff]
    %v82 = vld [vmem:[#allocation2 + $0x280] sm:$0xff]
    %v83 = vld [vmem:[#allocation2 + $0x2b8] sm:$0xff]
    %v84 = vld [vmem:[#allocation2 + $0x2f0] sm:$0xff]
    %v85 = vld [vmem:[#allocation2 + $0x328] sm:$0xff]
    %v86 = vld [vmem:[#allocation2 + $0x360] sm:$0xff]
    %v87 = vld [vmem:[#allocation2 + $0x20] sm:$0xff]
    %v88 = vld [vmem:[#allocation2 + $0x58] sm:$0xff]
    %v89 = vld [vmem:[#allocation2 + $0x90] sm:$0xff]
    %v90 = vld [vmem:[#allocation2 + $0xc8] sm:$0xff]
    %v91 = vld [vmem:[#allocation2 + $0x100] sm:$0xff]
    %v92 = vld [vmem:[#allocation2 + $0x138] sm:$0xff]
    %v93 = vld [vmem:[#allocation2 + $0x170] sm:$0xff]
    %v94 = vld [vmem:[#allocation2 + $0x1a8] sm:$0xff]
    %v95 = vld [vmem:[#allocation2 + $0x1e0] sm:$0xff]
    %v96 = vld [vmem:[#allocation2 + $0x218] sm:$0xff]
    %v97 = vld [vmem:[#allocation2 + $0x250] sm:$0xff]
    %v98 = vld [vmem:[#allocation2 + $0x288] sm:$0xff]
    %v99 = vld [vmem:[#allocation2 + $0x2c0] sm:$0xff]
    %v100 = vld [vmem:[#allocation2 + $0x2f8] sm:$0xff]
    %v101 = vld [vmem:[#allocation2 + $0x330] sm:$0xff]
    %v102 = vld [vmem:[#allocation2 + $0x368] sm:$0xff]
    %v103 = vld [vmem:[#allocation2 + $0x28] sm:$0xff]
    %v104 = vld [vmem:[#allocation2 + $0x30] sm:$0xff]
    %v105 = vld [vmem:[#allocation2 + $0x60] sm:$0xff]
    %v106 = vld [vmem:[#allocation2 + $0x68] sm:$0xff]
    %v107 = vld [vmem:[#allocation2 + $0x98] sm:$0xff]
    %v108 = vld [vmem:[#allocation2 + $0xa0] sm:$0xff]
    %v109 = vld [vmem:[#allocation2 + $0xd0] sm:$0xff]
    %v110 = vld [vmem:[#allocation2 + $0xd8] sm:$0xff]
    %v111 = vld [vmem:[#allocation2 + $0x108] sm:$0xff]
    %v112 = vld [vmem:[#allocation2 + $0x110] sm:$0xff]
    %v113 = vld [vmem:[#allocation2 + $0x140] sm:$0xff]
    %v114 = vld [vmem:[#allocation2 + $0x148] sm:$0xff]
    %v115 = vld [vmem:[#allocation2 + $0x178] sm:$0xff]
    %v116 = vld [vmem:[#allocation2 + $0x180] sm:$0xff]
    %v117 = vld [vmem:[#allocation2 + $0x1b0] sm:$0xff]
    %v118 = vld [vmem:[#allocation2 + $0x1b8] sm:$0xff]
    %v119 = vld [vmem:[#allocation2 + $0x1e8] sm:$0xff]
    %v120 = vld [vmem:[#allocation2 + $0x1f0] sm:$0xff]
    %v121 = vld [vmem:[#allocation2 + $0x220] sm:$0xff]
    %v122 = vld [vmem:[#allocation2 + $0x228] sm:$0xff]
    %v123 = vld [vmem:[#allocation2 + $0x258] sm:$0xff]
    %v124 = vld [vmem:[#allocation2 + $0x260] sm:$0xff]
    %v125 = vld [vmem:[#allocation2 + $0x290] sm:$0xff]
    %v126 = vld [vmem:[#allocation2 + $0x298] sm:$0xff]
    %v127 = vld [vmem:[#allocation2 + $0x2c8] sm:$0xff]
    %v128 = vld [vmem:[#allocation2 + $0x2d0] sm:$0xff]
    %v129 = vld [vmem:[#allocation2 + $0x300] sm:$0xff]
    %v130 = vld [vmem:[#allocation2 + $0x308] sm:$0xff]
    %v131 = vld [vmem:[#allocation2 + $0x338] sm:$0xff]
    %v132 = vld [vmem:[#allocation2 + $0x340] sm:$0xff]
    %v133 = vld [vmem:[#allocation2 + $0x370] sm:$0xff]
    %v134 = vld [vmem:[#allocation2 + $0x378] sm:$0xff]
    %v135 = vld [vmem:[%s3] sm:$0x1]
    %v136 = vld [vmem:[%s3 + $0x1] sm:$0x7]
    %v137 = vld [vmem:[%s3 + $0x4] sm:$0x1]
    %v138 = vld [vmem:[%s3 + $0x5] sm:$0x3]
    %v139 = vld [vmem:[%s0] sm:$0xff]
    %v140 = vld [vmem:[%s0 + $0x8] sm:$0xff]
    %v142 = vlaneseq
    %v143 = vshrl.u32 %v142, 7
    %v144 = vsub.s32 0, %v143
    %v145 = vrot.slane %v135, %v144
    %147 = vmatprep.subr.mxu0 0.0
    %148 = vmatpush1.msra.mxu0 %v70
    %149 = vmatprep.subr.mxu0 0.0
    %150 = vmatpush1.msra.mxu0 %v69
    %151 = vmatprep.subr.mxu0 0.0
    %152 = vmatpush1.msra.mxu0 %v68
    %153 = vmatprep.subr.mxu0 0.0
    %154 = vmatpush1.msra.mxu0 %v67
    %155 = vmatprep.subr.mxu0 0.0
    %156 = vmatpush1.msra.mxu0 %v66
    %157 = vmatprep.subr.mxu0 0.0
    %158 = vmatpush1.msra.mxu0 %v65
    %159 = vmatprep.subr.mxu0 0.0
    %160 = vmatpush1.msra.mxu0 %v64
    %161 = vmatprep.subr.mxu0 0.0
    %162 = vmatpush1.msra.mxu0 %v63
    %163 = vmatprep.subr.mxu0 0.0
    %164 = vmatpush1.msra.mxu0 %v62
    %165 = vmatprep.subr.mxu0 0.0
    %166 = vmatpush1.msra.mxu0 %v61
    %167 = vmatprep.subr.mxu0 0.0
    %168 = vmatpush1.msra.mxu0 %v60
    %169 = vmatprep.subr.mxu0 0.0
    %170 = vmatpush1.msra.mxu0 %v59
    %171 = vmatprep.subr.mxu0 0.0
    %172 = vmatpush1.msra.mxu0 %v58
    %173 = vmatprep.subr.mxu0 0.0
    %174 = vmatpush1.msra.mxu0 %v57
    %175 = vmatprep.subr.mxu0 0.0
    %176 = vmatpush1.msra.mxu0 %v56
    %177 = vmatprep.subr.mxu0 0.0
    %178 = vmatpush1.msra.mxu0 %v55
    %179 = vmatprep.subr.mxu0 0.0
    %180 = vmatpush2.msra.mxu0 0.0
    %181 = vmatprep.subr.mxu0 0.0
    %182 = vmatpush2.msra.mxu0 0.0
    %183 = vmatprep.subr.mxu0 0.0
    %184 = vmatpush2.msra.mxu0 0.0
    %185 = vmatprep.subr.mxu0 0.0
    %186 = vmatpush2.msra.mxu0 0.0
    %187 = vmatprep.subr.mxu0 0.0
    %188 = vmatpush2.msra.mxu0 0.0
    %189 = vmatprep.subr.mxu0 0.0
    %190 = vmatpush2.msra.mxu0 0.0
    %191 = vmatprep.subr.mxu0 0.0
    %192 = vmatpush2.msra.mxu0 0.0
    %193 = vmatprep.subr.mxu0 0.0
    %194 = vmatpush2.msra.mxu0 0.0
    %195 = vmatprep.subr.mxu0 0.0
    %196 = vmatpush2.msra.mxu0 0.0
    %197 = vmatprep.subr.mxu0 0.0
    %198 = vmatpush2.msra.mxu0 0.0
    %199 = vmatprep.subr.mxu0 0.0
    %200 = vmatpush2.msra.mxu0 0.0
    %201 = vmatprep.subr.mxu0 0.0
    %202 = vmatpush2.msra.mxu0 0.0
    %203 = vmatprep.subr.mxu0 0.0
    %204 = vmatpush2.msra.mxu0 0.0
    %205 = vmatprep.subr.mxu0 0.0
    %206 = vmatpush2.msra.mxu0 0.0
    %207 = vmatprep.subr.mxu0 0.0
    %208 = vmatpush2.msra.mxu0 0.0
    %209 = vmatprep.subr.mxu0 0.0
    %210 = vmatpush2.msra.mxu0 0.0
    %211 = vmatprep.mubr.f32.mxu0 0.0
    %212 = vmatmul.mubr.f32.gmra.mxu0 %v139
    %v213 = vpop.f32.mrf.mxu0
    %v214 = vadd.f32 %v145, %v213
    %v215 = vpop.f32.mrf.mxu0
    %216 = vmatprep.mubr.f32.mxu0 0.0
    %217 = vmatmul.mubr.f32.gmra.mxu0 %v140
    %v218 = vpop.f32.mrf.mxu0
    %v219 = vadd.f32 %v145, %v218
    %v220 = vpop.f32.mrf.mxu0
    %221 = vdwg.mxu0
    %v222 = vmax.f32 %v214, 0.0
    %v223 = vmax.f32 %v219, 0.0
    %v224 = vld [vmem:[%s1] sm:$0xff]
    %v225 = vld [vmem:[%s1 + $0x8] sm:$0x3]
    %vm226 = vcmask 130048
    %v228 = vsel %vm226, %v224, 0
    %v231 = vsel %vm226, %v225, 0
    %233 = vmatprep.subr.mxu0 0.0
    %234 = vmatpush1.msra.mxu0 0.0
    %235 = vmatprep.subr.mxu0 0.0
    %236 = vmatpush1.msra.mxu0 0.0
    %237 = vmatprep.subr.mxu0 0.0
    %238 = vmatpush1.msra.mxu0 0.0
    %239 = vmatprep.subr.mxu0 0.0
    %240 = vmatpush1.msra.mxu0 0.0
    %241 = vmatprep.subr.mxu0 0.0
    %242 = vmatpush1.msra.mxu0 0.0
    %243 = vmatprep.subr.mxu0 0.0
    %244 = vmatpush1.msra.mxu0 0.0
    %245 = vmatprep.subr.mxu0 0.0
    %246 = vmatpush1.msra.mxu0 0.0
    %247 = vmatprep.subr.mxu0 0.0
    %248 = vmatpush1.msra.mxu0 0.0
    %249 = vmatprep.subr.mxu0 0.0
    %250 = vmatpush1.msra.mxu0 0.0
    %251 = vmatprep.subr.mxu0 0.0
    %252 = vmatpush1.msra.mxu0 0.0
    %253 = vmatprep.subr.mxu0 0.0
    %254 = vmatpush1.msra.mxu0 0.0
    %255 = vmatprep.subr.mxu0 0.0
    %256 = vmatpush1.msra.mxu0 0.0
    %257 = vmatprep.subr.mxu0 0.0
    %258 = vmatpush1.msra.mxu0 0.0
    %259 = vmatprep.subr.mxu0 0.0
    %260 = vmatpush1.msra.mxu0 0.0
    %261 = vmatprep.subr.mxu0 0.0
    %262 = vmatpush1.msra.mxu0 %v223
    %263 = vmatprep.subr.mxu0 0.0
    %264 = vmatpush1.msra.mxu0 %v222
    %265 = vmatprep.subr.mxu0 0.0
    %266 = vmatpush2.msra.mxu0 0.0
    %267 = vmatprep.subr.mxu0 0.0
    %268 = vmatpush2.msra.mxu0 0.0
    %269 = vmatprep.subr.mxu0 0.0
    %270 = vmatpush2.msra.mxu0 0.0
    %271 = vmatprep.subr.mxu0 0.0
    %272 = vmatpush2.msra.mxu0 0.0
    %273 = vmatprep.subr.mxu0 0.0
    %274 = vmatpush2.msra.mxu0 0.0
    %275 = vmatprep.subr.mxu0 0.0
    %276 = vmatpush2.msra.mxu0 0.0
    %277 = vmatprep.subr.mxu0 0.0
    %278 = vmatpush2.msra.mxu0 0.0
    %279 = vmatprep.subr.mxu0 0.0
    %280 = vmatpush2.msra.mxu0 0.0
    %281 = vmatprep.subr.mxu0 0.0
    %282 = vmatpush2.msra.mxu0 0.0
    %283 = vmatprep.subr.mxu0 0.0
    %284 = vmatpush2.msra.mxu0 0.0
    %285 = vmatprep.subr.mxu0 0.0
    %286 = vmatpush2.msra.mxu0 0.0
    %287 = vmatprep.subr.mxu0 0.0
    %288 = vmatpush2.msra.mxu0 0.0
    %289 = vmatprep.subr.mxu0 0.0
    %290 = vmatpush2.msra.mxu0 0.0
    %291 = vmatprep.subr.mxu0 0.0
    %292 = vmatpush2.msra.mxu0 0.0
    %293 = vmatprep.subr.mxu0 0.0
    %294 = vmatpush2.msra.mxu0 0.0
    %295 = vmatprep.subr.mxu0 0.0
    %296 = vmatpush2.msra.mxu0 0.0
    %297 = vmatprep.mubr.f32.mxu0 0.0
    %298 = vmatmul.mubr.f32.gmra.mxu0 %v228
    %v299 = vpop.f32.mrf.mxu0
    %v300 = vadd.f32 0.0, %v299
    %v301 = vpop.f32.mrf.mxu0
    %302 = vmatprep.mubr.f32.mxu0 0.0
    %303 = vmatmul.mubr.f32.gmra.mxu0 %v231
    %v304 = vpop.f32.mrf.mxu0
    %v305 = vadd.f32 0.0, %v304
    %v306 = vpop.f32.mrf.mxu0
    %307 = vdwg.mxu0
    %v309 = vlaneseq
    %v310 = vshrl.u32 %v309, 7
    %v311 = vsub.s32 2, %v310
    %v312 = vrot.slane %v136, %v311
    %314 = vmatprep.subr.mxu0 0.0
    %315 = vmatpush1.msra.mxu0 %v86
    %316 = vmatprep.subr.mxu0 0.0
    %317 = vmatpush1.msra.mxu0 %v85
    %318 = vmatprep.subr.mxu0 0.0
    %319 = vmatpush1.msra.mxu0 %v84
    %320 = vmatprep.subr.mxu0 0.0
    %321 = vmatpush1.msra.mxu0 %v83
    %322 = vmatprep.subr.mxu0 0.0
    %323 = vmatpush1.msra.mxu0 %v82
    %324 = vmatprep.subr.mxu0 0.0
    %325 = vmatpush1.msra.mxu0 %v81
    %326 = vmatprep.subr.mxu0 0.0
    %327 = vmatpush1.msra.mxu0 %v80
    %328 = vmatprep.subr.mxu0 0.0
    %329 = vmatpush1.msra.mxu0 %v79
    %330 = vmatprep.subr.mxu0 0.0
    %331 = vmatpush1.msra.mxu0 %v78
    %332 = vmatprep.subr.mxu0 0.0
    %333 = vmatpush1.msra.mxu0 %v77
    %334 = vmatprep.subr.mxu0 0.0
    %335 = vmatpush1.msra.mxu0 %v76
    %336 = vmatprep.subr.mxu0 0.0
    %337 = vmatpush1.msra.mxu0 %v75
    %338 = vmatprep.subr.mxu0 0.0
    %339 = vmatpush1.msra.mxu0 %v74
    %340 = vmatprep.subr.mxu0 0.0
    %341 = vmatpush1.msra.mxu0 %v73
    %342 = vmatprep.subr.mxu0 0.0
    %343 = vmatpush1.msra.mxu0 %v72
    %344 = vmatprep.subr.mxu0 0.0
    %345 = vmatpush1.msra.mxu0 %v71
    %346 = vmatprep.subr.mxu0 0.0
    %347 = vmatpush2.msra.mxu0 0.0
    %348 = vmatprep.subr.mxu0 0.0
    %349 = vmatpush2.msra.mxu0 0.0
    %350 = vmatprep.subr.mxu0 0.0
    %351 = vmatpush2.msra.mxu0 0.0
    %352 = vmatprep.subr.mxu0 0.0
    %353 = vmatpush2.msra.mxu0 0.0
    %354 = vmatprep.subr.mxu0 0.0
    %355 = vmatpush2.msra.mxu0 0.0
    %356 = vmatprep.subr.mxu0 0.0
    %357 = vmatpush2.msra.mxu0 0.0
    %358 = vmatprep.subr.mxu0 0.0
    %359 = vmatpush2.msra.mxu0 0.0
    %360 = vmatprep.subr.mxu0 0.0
    %361 = vmatpush2.msra.mxu0 0.0
    %362 = vmatprep.subr.mxu0 0.0
    %363 = vmatpush2.msra.mxu0 0.0
    %364 = vmatprep.subr.mxu0 0.0
    %365 = vmatpush2.msra.mxu0 0.0
    %366 = vmatprep.subr.mxu0 0.0
    %367 = vmatpush2.msra.mxu0 0.0
    %368 = vmatprep.subr.mxu0 0.0
    %369 = vmatpush2.msra.mxu0 0.0
    %370 = vmatprep.subr.mxu0 0.0
    %371 = vmatpush2.msra.mxu0 0.0
    %372 = vmatprep.subr.mxu0 0.0
    %373 = vmatpush2.msra.mxu0 0.0
    %374 = vmatprep.subr.mxu0 0.0
    %375 = vmatpush2.msra.mxu0 0.0
    %376 = vmatprep.subr.mxu0 0.0
    %377 = vmatpush2.msra.mxu0 0.0
    %378 = vmatprep.mubr.f32.mxu0 0.0
    %379 = vmatmul.mubr.f32.gmra.mxu0 %v300
    %v380 = vpop.f32.mrf.mxu0
    %v381 = vpop.f32.mrf.mxu0
    %382 = vmatprep.mubr.f32.mxu0 0.0
    %383 = vmatmul.mubr.f32.gmra.mxu0 %v305
    %v384 = vpop.f32.mrf.mxu0
    %v385 = vadd.f32 %v312, %v384
    %v386 = vpop.f32.mrf.mxu0
    %387 = vdwg.mxu0
    %v388 = vlaneseq
    %v389 = vand.u32 %v388, 127
    %v390 = vadd.s32 %v389, 128
    %v391 = vld [vmem:[%s6] sm:$0xff]
    %v392 = vld [vmem:[%s6 + $0x8] sm:$0xff]
    %393 = vset.pattern.permute.xlu0 0
    %394 = vperm.xlu0 %393, %v391
    %v395 = vpop.permute.xlu0 %394
    %396 = vset.pattern.permute.xlu0 0
    %397 = vperm.xlu0 %396, %v392
    %v398 = vpop.permute.xlu0 %397
    %vm399 = vcmp.eq.s32.totalorder %v389, %v395
    %vm400 = vcmp.eq.s32.totalorder %v390, %v395
    %vm401 = vcmp.eq.s32.totalorder %v389, %v398
    %vm402 = vcmp.eq.s32.totalorder %v390, %v398
    %v403 = vsel %vm399, 1, 0
    %v404 = vsel %vm400, 1, 0
    %v405 = vsel %vm401, 1, 0
    %v406 = vsel %vm402, 1, 0
    %v407 = vcvt.s32.f32 %v403
    %v408 = vcvt.s32.f32 %v404
    %v409 = vcvt.s32.f32 %v405
    %v410 = vcvt.s32.f32 %v406
    %v411 = vld [vmem:[#allocation5] sm:$0xff]
    %v412 = vld [vmem:[#allocation5 + $0x8] sm:$0xff]
    %v413 = vld [vmem:[#allocation5 + $0x10] sm:$0xff]
    %v414 = vld [vmem:[#allocation5 + $0x18] sm:$0xff]
    %v415 = vld [vmem:[#allocation5 + $0x20] sm:$0xff]
    %v416 = vld [vmem:[#allocation5 + $0x28] sm:$0xff]
    %v417 = vld [vmem:[#allocation5 + $0x30] sm:$0xff]
    %v418 = vld [vmem:[#allocation5 + $0x38] sm:$0xff]
    %v419 = vld [vmem:[#allocation5 + $0x40] sm:$0xff]
    %v420 = vld [vmem:[#allocation5 + $0x48] sm:$0xff]
    %v421 = vld [vmem:[#allocation5 + $0x50] sm:$0xff]
    %v422 = vld [vmem:[#allocation5 + $0x58] sm:$0xff]
    %v423 = vld [vmem:[#allocation5 + $0x60] sm:$0xff]
    %v424 = vld [vmem:[#allocation5 + $0x68] sm:$0xff]
    %v425 = vld [vmem:[#allocation5 + $0x70] sm:$0xff]
    %v426 = vld [vmem:[#allocation5 + $0x78] sm:$0xff]
    %v427 = vld [vmem:[#allocation5 + $0x80] sm:$0xff]
    %v428 = vld [vmem:[#allocation5 + $0x88] sm:$0xff]
    %v429 = vld [vmem:[#allocation5 + $0x90] sm:$0xff]
    %v430 = vld [vmem:[#allocation5 + $0x98] sm:$0xff]
    %v431 = vld [vmem:[#allocation5 + $0xa0] sm:$0xff]
    %v432 = vld [vmem:[#allocation5 + $0xa8] sm:$0xff]
    %v433 = vld [vmem:[#allocation5 + $0xb0] sm:$0xff]
    %v434 = vld [vmem:[#allocation5 + $0xb8] sm:$0xff]
    %v435 = vld [vmem:[#allocation5 + $0xc0] sm:$0xff]
    %v436 = vld [vmem:[#allocation5 + $0xc8] sm:$0xff]
    %v437 = vld [vmem:[#allocation5 + $0xd0] sm:$0xff]
    %v438 = vld [vmem:[#allocation5 + $0xd8] sm:$0xff]
    %v439 = vld [vmem:[#allocation5 + $0xe0] sm:$0xff]
    %v440 = vld [vmem:[#allocation5 + $0xe8] sm:$0xff]
    %v441 = vld [vmem:[#allocation5 + $0xf0] sm:$0xff]
    %v442 = vld [vmem:[#allocation5 + $0xf8] sm:$0xff]
    %v443 = vlaneseq
    %v444 = vshrl.u32 %v443, 7
    %v445 = vadd.s32 %v444, 8
    %vm446 = vcmp.eq.s32.totalorder %v444, 0
    %vm447 = vcmp.eq.s32.totalorder %v445, 0
    %v448 = vsel %vm446, 1, 0
    %v449 = vsel %vm447, 1, 0
    %vm450 = vcmp.eq.s32.totalorder %v448, 1
    %vm451 = vcmp.eq.s32.totalorder %v449, 1
    %v452 = vlaneseq
    %v453 = vshrl.u32 %v452, 7
    %v454 = vsub.s32 0, %v453
    %v455 = vrot.slane %v385, %v454
    %v456 = vsel %vm450, %v455, 0.0
    %v457 = vsel %vm451, %v455, 0.0
    %458 = vmatprep.subr.mxu0 0.0
    %459 = vmatpush1.msra.mxu0 %v426
    %460 = vmatprep.subr.mxu0 0.0
    %461 = vmatpush1.msra.mxu0 %v425
    %462 = vmatprep.subr.mxu0 0.0
    %463 = vmatpush1.msra.mxu0 %v424
    %464 = vmatprep.subr.mxu0 0.0
    %465 = vmatpush1.msra.mxu0 %v423
    %466 = vmatprep.subr.mxu0 0.0
    %467 = vmatpush1.msra.mxu0 %v422
    %468 = vmatprep.subr.mxu0 0.0
    %469 = vmatpush1.msra.mxu0 %v421
    %470 = vmatprep.subr.mxu0 0.0
    %471 = vmatpush1.msra.mxu0 %v420
    %472 = vmatprep.subr.mxu0 0.0
    %473 = vmatpush1.msra.mxu0 %v419
    %474 = vmatprep.subr.mxu0 0.0
    %475 = vmatpush1.msra.mxu0 %v418
    %476 = vmatprep.subr.mxu0 0.0
    %477 = vmatpush1.msra.mxu0 %v417
    %478 = vmatprep.subr.mxu0 0.0
    %479 = vmatpush1.msra.mxu0 %v416
    %480 = vmatprep.subr.mxu0 0.0
    %481 = vmatpush1.msra.mxu0 %v415
    %482 = vmatprep.subr.mxu0 0.0
    %483 = vmatpush1.msra.mxu0 %v414
    %484 = vmatprep.subr.mxu0 0.0
    %485 = vmatpush1.msra.mxu0 %v413
    %486 = vmatprep.subr.mxu0 0.0
    %487 = vmatpush1.msra.mxu0 %v412
    %488 = vmatprep.subr.mxu0 0.0
    %489 = vmatpush1.msra.mxu0 %v411
    %490 = vmatprep.subr.mxu0 0.0
    %491 = vmatpush2.msra.mxu0 %v442
    %492 = vmatprep.subr.mxu0 0.0
    %493 = vmatpush2.msra.mxu0 %v441
    %494 = vmatprep.subr.mxu0 0.0
    %495 = vmatpush2.msra.mxu0 %v440
    %496 = vmatprep.subr.mxu0 0.0
    %497 = vmatpush2.msra.mxu0 %v439
    %498 = vmatprep.subr.mxu0 0.0
    %499 = vmatpush2.msra.mxu0 %v438
    %500 = vmatprep.subr.mxu0 0.0
    %501 = vmatpush2.msra.mxu0 %v437
    %502 = vmatprep.subr.mxu0 0.0
    %503 = vmatpush2.msra.mxu0 %v436
    %504 = vmatprep.subr.mxu0 0.0
    %505 = vmatpush2.msra.mxu0 %v435
    %506 = vmatprep.subr.mxu0 0.0
    %507 = vmatpush2.msra.mxu0 %v434
    %508 = vmatprep.subr.mxu0 0.0
    %509 = vmatpush2.msra.mxu0 %v433
    %510 = vmatprep.subr.mxu0 0.0
    %511 = vmatpush2.msra.mxu0 %v432
    %512 = vmatprep.subr.mxu0 0.0
    %513 = vmatpush2.msra.mxu0 %v431
    %514 = vmatprep.subr.mxu0 0.0
    %515 = vmatpush2.msra.mxu0 %v430
    %516 = vmatprep.subr.mxu0 0.0
    %517 = vmatpush2.msra.mxu0 %v429
    %518 = vmatprep.subr.mxu0 0.0
    %519 = vmatpush2.msra.mxu0 %v428
    %520 = vmatprep.subr.mxu0 0.0
    %521 = vmatpush2.msra.mxu0 %v427
    %522 = vmatprep.mubr.f32.mxu0 %v408
    %523 = vmatmul.mubr.f32.gmra.mxu0 %v407
    %v524 = vpop.f32.mrf.mxu0
    %v525 = vadd.f32 %v456, %v524
    %v526 = vpop.f32.mrf.mxu0
    %527 = vmatprep.mubr.f32.mxu0 %v410
    %528 = vmatmul.mubr.f32.gmra.mxu0 %v409
    %v529 = vpop.f32.mrf.mxu0
    %v530 = vadd.f32 %v457, %v529
    %v531 = vpop.f32.mrf.mxu0
    %532 = vdwg.mxu0
    %vm533 = vcmp.eq.s32.totalorder %v444, 8
    %vm534 = vcmp.eq.s32.totalorder %v445, 8
    %v535 = vsel %vm533, 1, 0
    %v536 = vsel %vm534, 1, 0
    %vm537 = vcmp.eq.s32.totalorder %v535, 1
    %vm538 = vcmp.eq.s32.totalorder %v536, 1
    %v539 = vlaneseq
    %v540 = vshrl.u32 %v539, 7
    %v541 = vsub.s32 1, %v540
    %v542 = vrot.slane %v385, %v541
    %v543 = vsel %vm537, %v542, 0.0
    %v544 = vsel %vm538, %v542, 0.0
    %v545 = vadd.f32 %v525, %v543
    %v546 = vadd.f32 %v530, %v544
    %v548 = vlaneseq
    %v549 = vshrl.u32 %v548, 7
    %v550 = vsub.s32 0, %v549
    %v551 = vrot.slane %v137, %v550
    %553 = vmatprep.subr.mxu0 0.0
    %554 = vmatpush1.msra.mxu0 %v102
    %555 = vmatprep.subr.mxu0 0.0
    %556 = vmatpush1.msra.mxu0 %v101
    %557 = vmatprep.subr.mxu0 0.0
    %558 = vmatpush1.msra.mxu0 %v100
    %559 = vmatprep.subr.mxu0 0.0
    %560 = vmatpush1.msra.mxu0 %v99
    %561 = vmatprep.subr.mxu0 0.0
    %562 = vmatpush1.msra.mxu0 %v98
    %563 = vmatprep.subr.mxu0 0.0
    %564 = vmatpush1.msra.mxu0 %v97
    %565 = vmatprep.subr.mxu0 0.0
    %566 = vmatpush1.msra.mxu0 %v96
    %567 = vmatprep.subr.mxu0 0.0
    %568 = vmatpush1.msra.mxu0 %v95
    %569 = vmatprep.subr.mxu0 0.0
    %570 = vmatpush1.msra.mxu0 %v94
    %571 = vmatprep.subr.mxu0 0.0
    %572 = vmatpush1.msra.mxu0 %v93
    %573 = vmatprep.subr.mxu0 0.0
    %574 = vmatpush1.msra.mxu0 %v92
    %575 = vmatprep.subr.mxu0 0.0
    %576 = vmatpush1.msra.mxu0 %v91
    %577 = vmatprep.subr.mxu0 0.0
    %578 = vmatpush1.msra.mxu0 %v90
    %579 = vmatprep.subr.mxu0 0.0
    %580 = vmatpush1.msra.mxu0 %v89
    %581 = vmatprep.subr.mxu0 0.0
    %582 = vmatpush1.msra.mxu0 %v88
    %583 = vmatprep.subr.mxu0 0.0
    %584 = vmatpush1.msra.mxu0 %v87
    %585 = vmatprep.subr.mxu0 0.0
    %586 = vmatpush2.msra.mxu0 0.0
    %587 = vmatprep.subr.mxu0 0.0
    %588 = vmatpush2.msra.mxu0 0.0
    %589 = vmatprep.subr.mxu0 0.0
    %590 = vmatpush2.msra.mxu0 0.0
    %591 = vmatprep.subr.mxu0 0.0
    %592 = vmatpush2.msra.mxu0 0.0
    %593 = vmatprep.subr.mxu0 0.0
    %594 = vmatpush2.msra.mxu0 0.0
    %595 = vmatprep.subr.mxu0 0.0
    %596 = vmatpush2.msra.mxu0 0.0
    %597 = vmatprep.subr.mxu0 0.0
    %598 = vmatpush2.msra.mxu0 0.0
    %599 = vmatprep.subr.mxu0 0.0
    %600 = vmatpush2.msra.mxu0 0.0
    %601 = vmatprep.subr.mxu0 0.0
    %602 = vmatpush2.msra.mxu0 0.0
    %603 = vmatprep.subr.mxu0 0.0
    %604 = vmatpush2.msra.mxu0 0.0
    %605 = vmatprep.subr.mxu0 0.0
    %606 = vmatpush2.msra.mxu0 0.0
    %607 = vmatprep.subr.mxu0 0.0
    %608 = vmatpush2.msra.mxu0 0.0
    %609 = vmatprep.subr.mxu0 0.0
    %610 = vmatpush2.msra.mxu0 0.0
    %611 = vmatprep.subr.mxu0 0.0
    %612 = vmatpush2.msra.mxu0 0.0
    %613 = vmatprep.subr.mxu0 0.0
    %614 = vmatpush2.msra.mxu0 0.0
    %615 = vmatprep.subr.mxu0 0.0
    %616 = vmatpush2.msra.mxu0 0.0
    %617 = vmatprep.mubr.f32.mxu0 0.0
    %618 = vmatmul.mubr.f32.gmra.mxu0 %v545
    %v619 = vpop.f32.mrf.mxu0
    %v620 = vadd.f32 %v551, %v619
    %v621 = vpop.f32.mrf.mxu0
    %622 = vmatprep.mubr.f32.mxu0 0.0
    %623 = vmatmul.mubr.f32.gmra.mxu0 %v546
    %v624 = vpop.f32.mrf.mxu0
    %v625 = vadd.f32 %v551, %v624
    %v626 = vpop.f32.mrf.mxu0
    %627 = vdwg.mxu0
    %v628 = vmax.f32 %v620, 0.0
    %v629 = vmax.f32 %v625, 0.0
    %v631 = vlaneseq
    %v632 = vshrl.u32 %v631, 7
    %v633 = vsub.s32 0, %v632
    %v634 = vrot.slane %v138, %v633
    %v635 = vlaneseq
    %v636 = vshrl.u32 %v635, 7
    %v637 = vsub.s32 1, %v636
    %v638 = vrot.slane %v138, %v637
    %641 = vmatprep.subr.mxu0 %v134
    %642 = vmatpush1.msra.mxu0 %v133
    %643 = vmatprep.subr.mxu0 %v132
    %644 = vmatpush1.msra.mxu0 %v131
    %645 = vmatprep.subr.mxu0 %v130
    %646 = vmatpush1.msra.mxu0 %v129
    %647 = vmatprep.subr.mxu0 %v128
    %648 = vmatpush1.msra.mxu0 %v127
    %649 = vmatprep.subr.mxu0 %v126
    %650 = vmatpush1.msra.mxu0 %v125
    %651 = vmatprep.subr.mxu0 %v124
    %652 = vmatpush1.msra.mxu0 %v123
    %653 = vmatprep.subr.mxu0 %v122
    %654 = vmatpush1.msra.mxu0 %v121
    %655 = vmatprep.subr.mxu0 %v120
    %656 = vmatpush1.msra.mxu0 %v119
    %657 = vmatprep.subr.mxu0 %v118
    %658 = vmatpush1.msra.mxu0 %v117
    %659 = vmatprep.subr.mxu0 %v116
    %660 = vmatpush1.msra.mxu0 %v115
    %661 = vmatprep.subr.mxu0 %v114
    %662 = vmatpush1.msra.mxu0 %v113
    %663 = vmatprep.subr.mxu0 %v112
    %664 = vmatpush1.msra.mxu0 %v111
    %665 = vmatprep.subr.mxu0 %v110
    %666 = vmatpush1.msra.mxu0 %v109
    %667 = vmatprep.subr.mxu0 %v108
    %668 = vmatpush1.msra.mxu0 %v107
    %669 = vmatprep.subr.mxu0 %v106
    %670 = vmatpush1.msra.mxu0 %v105
    %671 = vmatprep.subr.mxu0 %v104
    %672 = vmatpush1.msra.mxu0 %v103
    %673 = vmatprep.subr.mxu0 0.0
    %674 = vmatpush2.msra.mxu0 0.0
    %675 = vmatprep.subr.mxu0 0.0
    %676 = vmatpush2.msra.mxu0 0.0
    %677 = vmatprep.subr.mxu0 0.0
    %678 = vmatpush2.msra.mxu0 0.0
    %679 = vmatprep.subr.mxu0 0.0
    %680 = vmatpush2.msra.mxu0 0.0
    %681 = vmatprep.subr.mxu0 0.0
    %682 = vmatpush2.msra.mxu0 0.0
    %683 = vmatprep.subr.mxu0 0.0
    %684 = vmatpush2.msra.mxu0 0.0
    %685 = vmatprep.subr.mxu0 0.0
    %686 = vmatpush2.msra.mxu0 0.0
    %687 = vmatprep.subr.mxu0 0.0
    %688 = vmatpush2.msra.mxu0 0.0
    %689 = vmatprep.subr.mxu0 0.0
    %690 = vmatpush2.msra.mxu0 0.0
    %691 = vmatprep.subr.mxu0 0.0
    %692 = vmatpush2.msra.mxu0 0.0
    %693 = vmatprep.subr.mxu0 0.0
    %694 = vmatpush2.msra.mxu0 0.0
    %695 = vmatprep.subr.mxu0 0.0
    %696 = vmatpush2.msra.mxu0 0.0
    %697 = vmatprep.subr.mxu0 0.0
    %698 = vmatpush2.msra.mxu0 0.0
    %699 = vmatprep.subr.mxu0 0.0
    %700 = vmatpush2.msra.mxu0 0.0
    %701 = vmatprep.subr.mxu0 0.0
    %702 = vmatpush2.msra.mxu0 0.0
    %703 = vmatprep.subr.mxu0 0.0
    %704 = vmatpush2.msra.mxu0 0.0
    %705 = vmatprep.mubr.f32.mxu0 0.0
    %706 = vmatmul.mubr.f32.gmra.mxu0 %v628
    %v707 = vpop.f32.mrf.mxu0
    %v708 = vadd.f32 %v634, %v707
    %v709 = vpop.f32.mrf.mxu0
    %v710 = vadd.f32 %v638, %v709
    %711 = vmatprep.mubr.f32.mxu0 0.0
    %712 = vmatmul.mubr.f32.gmra.mxu0 %v629
    %v713 = vpop.f32.mrf.mxu0
    %v714 = vadd.f32 %v634, %v713
    %v715 = vpop.f32.mrf.mxu0
    %v716 = vadd.f32 %v638, %v715
    %717 = vdwg.mxu0
    %v718 = vmax.f32 %v708, %v710
    %719 = vmax.xlane.f32.xlu0 %v718
    %v720 = vpop.xlane.xlu0 %719
    %v721 = vmax.f32 %v714, %v716
    %722 = vmax.xlane.f32.xlu0 %v721
    %v723 = vpop.xlane.xlu0 %722
    %v724 = vsub.f32 %v708, %v720
    %v725 = vsub.f32 %v710, %v720
    %v726 = vsub.f32 %v714, %v723
    %v727 = vsub.f32 %v716, %v723
    %v728 = vmul.f32 %v724, 1.442695
    %v729 = vpow.pop %v728
    %v730 = vmul.f32 %v725, 1.442695
    %v731 = vpow.pop %v730
    %v732 = vmul.f32 %v726, 1.442695
    %v733 = vpow.pop %v732
    %v734 = vmul.f32 %v727, 1.442695
    %v735 = vpow.pop %v734
    %v736 = vadd.f32 %v729, %v731
    %737 = vadd.xlane.f32.xlu0 %v736
    %v738 = vpop.xlane.xlu0 %737
    %v739 = vadd.f32 %v733, %v735
    %740 = vadd.xlane.f32.xlu0 %v739
    %v741 = vpop.xlane.xlu0 %740
    %v742 = vlog2.pop %v738
    %v743 = vmul.f32 %v742, 0.6931472
    %v744 = vlog2.pop %v741
    %v745 = vmul.f32 %v744, 0.6931472
    %v746 = vadd.f32 %v720, %v743
    %v747 = vadd.f32 %v723, %v745
    %v748 = vld [vmem:[%s5] sm:$0xff]
    %v749 = vld [vmem:[%s5 + $0x8] sm:$0xff]
    %750 = vset.pattern.permute.xlu0 0
    %751 = vperm.xlu0 %750, %v748
    %v752 = vpop.permute.xlu0 %751
    %753 = vset.pattern.permute.xlu0 0
    %754 = vperm.xlu0 %753, %v749
    %v755 = vpop.permute.xlu0 %754
    %vm756 = vcmp.eq.s32.totalorder %v389, %v752
    %vm757 = vcmp.eq.s32.totalorder %v390, %v752
    %vm758 = vcmp.eq.s32.totalorder %v389, %v755
    %vm759 = vcmp.eq.s32.totalorder %v390, %v755
    %v760 = vsel %vm756, 1, 0
    %v761 = vsel %vm757, 1, 0
    %v762 = vsel %vm758, 1, 0
    %v763 = vsel %vm759, 1, 0
    %v764 = vcvt.s32.f32 %v760
    %v765 = vcvt.s32.f32 %v761
    %v766 = vcvt.s32.f32 %v762
    %v767 = vcvt.s32.f32 %v763
    %v768 = vmul.f32 %v708, %v764
    %v769 = vmul.f32 %v710, %v765
    %v770 = vmul.f32 %v714, %v766
    %v771 = vmul.f32 %v716, %v767
    %v772 = vadd.f32 %v768, %v769
    %773 = vadd.xlane.f32.xlu0 %v772
    %v774 = vpop.xlane.xlu0 %773
    %v775 = vadd.f32 %v770, %v771
    %776 = vadd.xlane.f32.xlu0 %v775
    %v777 = vpop.xlane.xlu0 %776
    %v778 = vsub.f32 %v746, %v774
    %v779 = vsub.f32 %v747, %v777
    %v780 = vadd.f32 %v778, %v779
    %v781 = vrot.slane %v780, 4
    %v782 = vadd.f32 %v780, %v781
    %v783 = vrot.slane %v782, 2
    %v784 = vadd.f32 %v782, %v783
    %v785 = vrot.slane %v784, 1
    %v786 = vadd.f32 %v784, %v785
    %v787 = vmul.f32 %v786, 0.0625
    %788 = vst [vmem:[#allocation7] sm:$0x1] %v787
    // Predicated region
    $region38: #{prefix_model_forward.1} parent=1 // pred_check
      _
    $region39: #{prefix_model_forward.1} parent=1 // pred_check_branch
      %790 = sbr.rel (0) target = $region41
    $region40: #{prefix_model_forward.1} parent=1 // pred_region
      %s792 = ssub.s32 16, 16
      %793 = vsyncadd [#allocation4], %s792
      %s795 = sshll.u32 [#allocation7], 4
      %s796 = int_to_ptr.vmem [resolvable:$true] %s795
      %798 = dma.vmem_to_hbm [thread:$0]  %s796, 16, %s7, [#allocation4]
    $region41: #{prefix_model_forward.1} parent=1 // pred_fallthru
      _
    // Predicated region
    $region42: #{prefix_model_forward.1} parent=1 // pred_check
      _
    $region43: #{prefix_model_forward.1} parent=1 // pred_check_branch
      %800 = sbr.rel (0) target = $region45
    $region44: #{prefix_model_forward.1} parent=1 // pred_region
      %801 = dma.done [#allocation4], 16
    $region45: #{prefix_model_forward.1} parent=1 // pred_fallthru
      _
    %802 = vsyncpa [#allocation3], 1
    %803 = vsyncpa [#allocation6], 1
    %804 = vsyncpa [#allocation4], 1

</llo_original>
